<compile_context>
chip_gen: v7x
topology: tpu7x:2x2x1
jax: 0.10.0
libtpu: 0.0.40
codegen_flags: <defaults>
</compile_context>

<pallas_src>
import jax
import jax.numpy as jnp
import numpy as np
from jax.experimental import pallas as pl
from jax.experimental.pallas import tpu as pltpu


def _round_up(a, m):
    return ((a + m - 1) // m) * m


def _vmem_limit_bytes():
    """Per-generation VMEM request: v7x has 64 MiB physical, older TPUs 128 MiB."""
    try:
        kind = jax.devices()[0].device_kind.lower()
    except Exception:  # pragma: no cover - defensive
        kind = ""
    if "v7" in kind:
        return 44 * 1024 * 1024
    if any(v in kind for v in ("v2", "v3", "v4", "v5", "v6")):
        return 100 * 1024 * 1024
    return 44 * 1024 * 1024  # unknown chip: stay conservative


def _final_head_kernel_f32out(x_ref, w_ref, b_ref, o_ref):
    # f32 output: accumulate directly into the (K-resident) output tile.
    # Bias is folded into the k == 0 step: no zero-fill, no scratch, no copy.
    k = pl.program_id(2)
    prod = jnp.dot(x_ref[...], w_ref[...], preferred_element_type=jnp.float32)

    @pl.when(k == 0)
    def _():
        o_ref[...] = b_ref[...] + prod

    @pl.when(k != 0)
    def _():
        o_ref[...] = o_ref[...] + prod


def _final_head_kernel_acc(x_ref, w_ref, b_ref, o_ref, acc_ref):
    # Narrow output dtype (e.g. bf16): keep an f32 VMEM accumulator, cast once.
    k = pl.program_id(2)
    prod = jnp.dot(x_ref[...], w_ref[...], preferred_element_type=jnp.float32)

    @pl.when(k == 0)
    def _():
        acc_ref[...] = b_ref[...] + prod

    @pl.when(k != 0)
    def _():
        acc_ref[...] = acc_ref[...] + prod

    @pl.when(k == pl.num_programs(2) - 1)
    def _():
        o_ref[...] = acc_ref[...].astype(o_ref.dtype)


def final_head_forward(x, w_t, bias, *, tile_b=512, tile_n=256, tile_k=1024,
                       use_bf16=False, allow_weight_resident=True):
    """y = x @ w_t + bias  (== FinalHead.forward).

    x:    (B, In)
    w_t:  (In, Out)  weight stored pre-transposed (no per-call transpose)
    bias: (Out,)
    """
    out_dtype = x.dtype
    B, In = x.shape
    In_w, Out = w_t.shape
    assert In == In_w, "weight/in-feature mismatch"

    if use_bf16:
        # bf16 streaming fast path: halves HBM traffic, f32 accumulation kept.
        x = x.astype(jnp.bfloat16)
        w_t = w_t.astype(jnp.bfloat16)

    itemsize = jnp.dtype(x.dtype).itemsize
    out_itemsize = jnp.dtype(out_dtype).itemsize
    sub = 16 if itemsize == 2 else (32 if itemsize == 1 else 8)  # sublane pack
    vmem_limit = _vmem_limit_bytes()

    In_al = _round_up(In, 128)    # lane-aligned K
    Out_al = _round_up(Out, 128)  # lane-dense output (tiny Out=1 -> 128)

    tb = min(_round_up(tile_b, sub), _round_up(B, sub))

    # Weight-resident branch: full-K / full-N tiles when everything fits, so the
    # weight block index never changes -> fetched from HBM exactly once.
    resident_bytes = (2 * In_al * Out_al * itemsize      # weight (double-buffered)
                      + 2 * tb * In_al * itemsize        # x tiles
                      + 3 * tb * Out_al * 4)             # out tiles + f32 acc
    if allow_weight_resident and resident_bytes <= int(0.75 * vmem_limit):
        tk, tn = In_al, Out_al
    else:
        tn = min(_round_up(tile_n, 128), Out_al)
        tk = min(_round_up(tile_k, 128), In_al)

    B_pad = _round_up(B, tb)
    In_pad = _round_up(In, tk)
    Out_pad = _round_up(Out, tn)
    pad_b, pad_k, pad_n = B_pad - B, In_pad - In, Out_pad - Out

    # Zero-pad to tile multiples (zero K padding keeps the reduction exact).
    x_p = jnp.pad(x, ((0, pad_b), (0, pad_k))) if (pad_b or pad_k) else x
    w_p = jnp.pad(w_t, ((0, pad_k), (0, pad_n))) if (pad_k or pad_n) else w_t
    b_p = bias.reshape(1, Out).astype(jnp.float32)
    if pad_n:
        b_p = jnp.pad(b_p, ((0, 0), (0, pad_n)))

    nb, nn, nk = B_pad // tb, Out_pad // tn, In_pad // tk
    grid = (nb, nn, nk)

    # Actual streamed traffic: x once per Out tile, weight once per batch tile
    # unless it is resident (constant block index -> single fetch).
    w_passes = 1 if (nn == 1 and nk == 1) else nb
    cost = pl.CostEstimate(
        flops=2 * B_pad * In_pad * Out_pad,
        transcendentals=0,
        bytes_accessed=(itemsize * (B_pad * In_pad * nn + In_pad * Out_pad * w_passes)
                        + 4 * Out_pad + out_itemsize * B_pad * Out_pad),
    )

    if jnp.dtype(out_dtype) == jnp.dtype(jnp.float32):
        kernel = _final_head_kernel_f32out
        scratch = []
    else:
        kernel = _final_head_kernel_acc
        scratch = [pltpu.VMEM((tb, tn), jnp.float32)]

    y_pad = pl.pallas_call(
        kernel,
        out_shape=jax.ShapeDtypeStruct((B_pad, Out_pad), out_dtype),
        grid_spec=pltpu.PrefetchScalarGridSpec(
            num_scalar_prefetch=0,
            grid=grid,
            in_specs=[
                # activations: resident w.r.t. the Out axis (ignores j)
                pl.BlockSpec((tb, tk), lambda i, j, k: (i, k)),
                # weight tiles stream (or stay resident when nn == nk == 1)
                pl.BlockSpec((tk, tn), lambda i, j, k: (k, j)),
                # bias tile (tiny, f32)
                pl.BlockSpec((1, tn), lambda i, j, k: (0, j)),
            ],
            out_specs=pl.BlockSpec((tb, tn), lambda i, j, k: (i, j)),
            scratch_shapes=scratch,
        ),
        compiler_params=pltpu.CompilerParams(
            dimension_semantics=("parallel", "parallel", "arbitrary"),
            vmem_limit_bytes=vmem_limit,
        ),
        cost_estimate=cost,
    )(x_p, w_p, b_p)

    if pad_b or pad_n:
        y_pad = y_pad[:B, :Out]
    return y_pad


def init_final_head(key, infeatures, noutputs=1, dtype=jnp.float32):
    """weights_init_normal: W ~ N(0, 1/sqrt(in_features)), b = 0.

    The weight is created directly in the transposed (In, Out) layout so no
    transpose ever runs on the forward path (distribution is identical).
    """
    w_t = (jax.random.normal(key, (infeatures, noutputs), dtype=jnp.float32)
           * (1.0 / np.sqrt(infeatures))).astype(dtype)
    bias = jnp.zeros((noutputs,), dtype=jnp.float32)
    return w_t, bias


if __name__ == "__main__":
    key = jax.random.PRNGKey(0)
    k_x, k_w, k_x2, k_w2, k_b2, k_x3, k_w3, k_b3 = jax.random.split(key, 8)

    # ---- small demo matching FinalHead(infeatures=32, noutputs=1) -----------
    batch, infeatures, noutputs = 8, 32, 1
    x = jax.random.normal(k_x, (batch, infeatures), dtype=jnp.float32)
    w_t, bias = init_final_head(k_w, infeatures, noutputs)

    y = jax.block_until_ready(final_head_forward(x, w_t, bias))
    assert y.shape == (batch, noutputs)
    y_ref = (np.asarray(x, np.float64) @ np.asarray(w_t, np.float64)
             + np.asarray(bias, np.float64))
    np.testing.assert_allclose(np.asarray(y), y_ref, rtol=1e-5, atol=1e-5)

    # ---- non-divisible shapes, forced streaming multi-K path (padding test) -
    B2, In2, Out2 = 200, 1000, 300
    x2 = jax.random.normal(k_x2, (B2, In2), dtype=jnp.float32)
    w2_t, _ = init_final_head(k_w2, In2, Out2)
    b2 = jax.random.normal(k_b2, (Out2,), dtype=jnp.float32) * 0.1
    y2 = jax.block_until_ready(final_head_forward(
        x2, w2_t, b2, tile_b=128, tile_n=128, tile_k=256,
        allow_weight_resident=False))
    assert y2.shape == (B2, Out2)
    y2_ref = (np.asarray(x2, np.float64) @ np.asarray(w2_t, np.float64)
              + np.asarray(b2, np.float64))
    np.testing.assert_allclose(np.asarray(y2), y2_ref, rtol=5e-4, atol=5e-4)

    # ---- bf16 inputs (f32 accumulation, bf16 output via scratch kernel) -----
    B3, In3, Out3 = 256, 512, 256
    x3 = jax.random.normal(k_x3, (B3, In3), dtype=jnp.float32).astype(jnp.bfloat16)
    w3_t, _ = init_final_head(k_w3, In3, Out3, dtype=jnp.bfloat16)
    b3 = jax.random.normal(k_b3, (Out3,), dtype=jnp.float32) * 0.1
    y3 = jax.block_until_ready(final_head_forward(x3, w3_t, b3))
    assert y3.shape == (B3, Out3) and y3.dtype == jnp.bfloat16
    y3_ref = (np.asarray(x3.astype(jnp.float32), np.float64)
              @ np.asarray(w3_t.astype(jnp.float32), np.float64)
              + np.asarray(b3, np.float64))
    np.testing.assert_allclose(np.asarray(y3.astype(jnp.float32), np.float64),
                               y3_ref, rtol=3e-2, atol=3e-2)

    print("KERNEL_OK")
</pallas_src>

<mosaic_0001>
module attributes {stable_mosaic.version = 11 : i64} {
  func.func @_final_head_kernel_f32out(%arg0: i32, %arg1: i32, %arg2: i32, %arg3: memref<8x128xf32, #tpu.memory_space<vmem>>, %arg4: memref<128x128xf32, #tpu.memory_space<vmem>>, %arg5: memref<1x128xf32, #tpu.memory_space<vmem>>, %arg6: memref<8x128xf32, #tpu.memory_space<vmem>>) attributes {dimension_semantics = [#tpu.dimension_semantics<parallel>, #tpu.dimension_semantics<parallel>, #tpu.dimension_semantics<arbitrary>], iteration_bounds = array<i64: 1, 1, 1>, scalar_prefetch = 0 : i64, scratch_operands = 0 : i64, tpu.core_type = #tpu.core_type<tc>, window_params = [{transform_indices = @transform_0, window_bounds = array<i64: 8, 128>}, {transform_indices = @transform_1, window_bounds = array<i64: 128, 128>}, {transform_indices = @transform_2, window_bounds = array<i64: 1, 128>}, {transform_indices = @transform_3, window_bounds = array<i64: 8, 128>}]} {
    %c0 = arith.constant 0 : index
    %c0_0 = arith.constant 0 : index
    %0 = vector.load %arg3[%c0, %c0_0] : memref<8x128xf32, #tpu.memory_space<vmem>>, vector<8x128xf32>
    %c0_1 = arith.constant 0 : index
    %c0_2 = arith.constant 0 : index
    %1 = vector.load %arg4[%c0_1, %c0_2] : memref<128x128xf32, #tpu.memory_space<vmem>>, vector<128x128xf32>
    %cst = arith.constant dense<0.000000e+00> : vector<8x128xf32>
    %2 = tpu.matmul %0, %1, %cst {dimension_numbers = #tpu.dot_dimension_numbers<[1], [0], [0], [1], [0, 0, 1, 1], [], []>} : vector<8x128xf32>, vector<128x128xf32>, vector<8x128xf32> -> vector<8x128xf32>
    %c0_i32 = arith.constant 0 : i32
    %3 = arith.cmpi eq, %arg2, %c0_i32 : i32
    %4 = arith.extui %3 : i1 to i32
    %c0_i32_3 = arith.constant 0 : i32
    %5 = arith.cmpi ne, %4, %c0_i32_3 : i32
    scf.if %5 {
      %c0_6 = arith.constant 0 : index
      %c0_7 = arith.constant 0 : index
      %9 = vector.load %arg5[%c0_6, %c0_7] : memref<1x128xf32, #tpu.memory_space<vmem>>, vector<1x128xf32>
      %10 = vector.broadcast %9 : vector<1x128xf32> to vector<8x128xf32>
      %11 = arith.addf %10, %2 : vector<8x128xf32>
      %c0_8 = arith.constant 0 : index
      %c0_9 = arith.constant 0 : index
      %12 = vector.load %arg6[%c0_8, %c0_9] : memref<8x128xf32, #tpu.memory_space<vmem>>, vector<8x128xf32>
      tpu.vector_store %arg6[%c0_8, %c0_9], %11 {strides = array<i32>} : memref<8x128xf32, #tpu.memory_space<vmem>>, vector<8x128xf32>,
    } else {
    }
    %c0_i32_4 = arith.constant 0 : i32
    %6 = arith.cmpi ne, %arg2, %c0_i32_4 : i32
    %7 = arith.extui %6 : i1 to i32
    %c0_i32_5 = arith.constant 0 : i32
    %8 = arith.cmpi ne, %7, %c0_i32_5 : i32
    scf.if %8 {
      %c0_6 = arith.constant 0 : index
      %c0_7 = arith.constant 0 : index
      %9 = vector.load %arg6[%c0_6, %c0_7] : memref<8x128xf32, #tpu.memory_space<vmem>>, vector<8x128xf32>
      %10 = arith.addf %9, %2 : vector<8x128xf32>
      %c0_8 = arith.constant 0 : index
      %c0_9 = arith.constant 0 : index
      %11 = vector.load %arg6[%c0_8, %c0_9] : memref<8x128xf32, #tpu.memory_space<vmem>>, vector<8x128xf32>
      tpu.vector_store %arg6[%c0_8, %c0_9], %10 {strides = array<i32>} : memref<8x128xf32, #tpu.memory_space<vmem>>, vector<8x128xf32>,
    } else {
    }
    return
  }
  func.func @transform_0(%arg0: i32, %arg1: i32, %arg2: i32) -> (i32, i32) {
    %c0_i32 = arith.constant 0 : i32
    return %arg0, %arg2 : i32, i32
  }
  func.func @transform_1(%arg0: i32, %arg1: i32, %arg2: i32) -> (i32, i32) {
    %c0_i32 = arith.constant 0 : i32
    return %arg2, %arg1 : i32, i32
  }
  func.func @transform_2(%arg0: i32, %arg1: i32, %arg2: i32) -> (i32, i32) {
    %c0_i32 = arith.constant 0 : i32
    %c0_i32_0 = arith.constant 0 : i32
    return %c0_i32, %arg1 : i32, i32
  }
  func.func @transform_3(%arg0: i32, %arg1: i32, %arg2: i32) -> (i32, i32) {
    %c0_i32 = arith.constant 0 : i32
    return %arg0, %arg1 : i32, i32
  }
}

</mosaic_0001>

<llo_original>
// kernel: tpu_custom_call.1
$region0: #{tpu_custom_call.1}
  #allocation0 [shape = 'u32[]', space=smem, size = 0x4, offset = 0x4, fixed_abs, tag = 'smem constant byte address 0x4 - core index']
  #allocation1 [shape = 'u32[144,128]{1,0:T(1,128)}', space=vmem, size = 0x12000, scoped, tag = 'internal scratch']
  %s0 = inlined_call_operand.hbm [shape: f32[8,128], index: 0, kind: input, shape index: {}]
  %s1 = inlined_call_operand.hbm [shape: f32[128,128], index: 1, kind: input, shape index: {}]
  %s2 = inlined_call_operand.vmem [shape: f32[1,128], index: 2, kind: input, shape index: {}]
  %s3 = inlined_call_operand.hbm [shape: f32[8,128], index: 3, kind: output, shape index: {}]
  %s4 = sld [smem:[#allocation0]]
  $region38: #{tpu_custom_call.1} parent=0
    _
  %s6 = ssub.s32 1, %s4
  %s7 = scalar_select 0, %s6, %s4
  $region1: #{tpu_custom_call.1} parent=0
    #allocation2 [shape = 'u8[4096]{0}', space=vmem, size = 0x1000, scoped, tag = 'input window, operand 0, single buffered']
    #allocation3 [shape = 's32[1]{0}', space=sflag, size = 0x4, scoped, tag = 'scoped memory for tpu_custom_call.1']
    #allocation4 [shape = 's32[1]{0}', space=sflag, size = 0x4, scoped, tag = 'scoped memory for tpu_custom_call.1']
    #allocation5 [shape = 'u8[65536]{0}', space=vmem, size = 0x10000, scoped, tag = 'input window, operand 1, single buffered']
    #allocation6 [shape = 's32[1]{0}', space=sflag, size = 0x4, scoped, tag = 'scoped memory for tpu_custom_call.1']
    #allocation7 [shape = 'u8[4096]{0}', space=vmem, size = 0x1000, scoped, tag = 'output window, operand 0, single buffered']
    %8 = vsyncpa [#allocation3], 0
    %9 = vsyncpa [#allocation6], 0
    %10 = vsyncpa [#allocation4], 0
    // Predicated region
    $region2: #{tpu_custom_call.1} parent=1 // pred_check
      _
    $region3: #{tpu_custom_call.1} parent=1 // pred_check_branch
      %12 = sbr.rel (0) target = $region5
    $region4: #{tpu_custom_call.1} parent=1 // pred_region
      %s14 = ssub.s32 128, 128
      %15 = vsyncadd [#allocation3], %s14
      %s17 = sshll.u32 [#allocation2], 4
      %s18 = int_to_ptr.vmem [resolvable:$true] %s17
      %20 = dma.hbm_to_vmem [thread:$0]  %s0, 128, %s18, [#allocation3]
    $region5: #{tpu_custom_call.1} parent=1 // pred_fallthru
      _
    // Predicated region
    $region6: #{tpu_custom_call.1} parent=1 // pred_check
      _
    $region7: #{tpu_custom_call.1} parent=1 // pred_check_branch
      %22 = sbr.rel (0) target = $region9
    $region8: #{tpu_custom_call.1} parent=1 // pred_region
      %s24 = ssub.s32 2048, 2048
      %25 = vsyncadd [#allocation6], %s24
      %s26 = sshll.u32 [#allocation5], 4
      %s27 = int_to_ptr.vmem [resolvable:$true] %s26
      %32 = dma.hbm_to_vmem [thread:$0]  %s1, 2048, %s27, [#allocation6], 128, 128, 8
    $region9: #{tpu_custom_call.1} parent=1 // pred_fallthru
      _
    // Predicated region
    $region10: #{tpu_custom_call.1} parent=1 // pred_check
      _
    $region11: #{tpu_custom_call.1} parent=1 // pred_check_branch
      %34 = sbr.rel (0) target = $region13
    $region12: #{tpu_custom_call.1} parent=1 // pred_region
      _
    $region13: #{tpu_custom_call.1} parent=1 // pred_fallthru
      _
    // Predicated region
    $region14: #{tpu_custom_call.1} parent=1 // pred_check
      _
    $region15: #{tpu_custom_call.1} parent=1 // pred_check_branch
      %36 = sbr.rel (0) target = $region17
    $region16: #{tpu_custom_call.1} parent=1 // pred_region
      %37 = dma.done [#allocation3], 128
    $region17: #{tpu_custom_call.1} parent=1 // pred_fallthru
      _
    // Predicated region
    $region18: #{tpu_custom_call.1} parent=1 // pred_check
      _
    $region19: #{tpu_custom_call.1} parent=1 // pred_check_branch
      %39 = sbr.rel (0) target = $region21
    $region20: #{tpu_custom_call.1} parent=1 // pred_region
      %40 = dma.done [#allocation6], 2048
    $region21: #{tpu_custom_call.1} parent=1 // pred_fallthru
      _
    %v41 = vld [vmem:[#allocation2] sm:$0xff]
    %v42 = vld [vmem:[#allocation5] sm:$0xff]
    %v43 = vld [vmem:[#allocation5 + $0x8] sm:$0xff]
    %v44 = vld [vmem:[#allocation5 + $0x10] sm:$0xff]
    %v45 = vld [vmem:[#allocation5 + $0x18] sm:$0xff]
    %v46 = vld [vmem:[#allocation5 + $0x20] sm:$0xff]
    %v47 = vld [vmem:[#allocation5 + $0x28] sm:$0xff]
    %v48 = vld [vmem:[#allocation5 + $0x30] sm:$0xff]
    %v49 = vld [vmem:[#allocation5 + $0x38] sm:$0xff]
    %v50 = vld [vmem:[#allocation5 + $0x40] sm:$0xff]
    %v51 = vld [vmem:[#allocation5 + $0x48] sm:$0xff]
    %v52 = vld [vmem:[#allocation5 + $0x50] sm:$0xff]
    %v53 = vld [vmem:[#allocation5 + $0x58] sm:$0xff]
    %v54 = vld [vmem:[#allocation5 + $0x60] sm:$0xff]
    %v55 = vld [vmem:[#allocation5 + $0x68] sm:$0xff]
    %v56 = vld [vmem:[#allocation5 + $0x70] sm:$0xff]
    %v57 = vld [vmem:[#allocation5 + $0x78] sm:$0xff]
    %58 = vmatprep.subr.mxu0 0.0
    %59 = vmatpush1.msra.mxu0 %v42
    %60 = vmatprep.subr.mxu0 0.0
    %61 = vmatpush1.msra.mxu0 %v43
    %62 = vmatprep.subr.mxu0 0.0
    %63 = vmatpush1.msra.mxu0 %v44
    %64 = vmatprep.subr.mxu0 0.0
    %65 = vmatpush1.msra.mxu0 %v45
    %66 = vmatprep.subr.mxu0 0.0
    %67 = vmatpush1.msra.mxu0 %v46
    %68 = vmatprep.subr.mxu0 0.0
    %69 = vmatpush1.msra.mxu0 %v47
    %70 = vmatprep.subr.mxu0 0.0
    %71 = vmatpush1.msra.mxu0 %v48
    %72 = vmatprep.subr.mxu0 0.0
    %73 = vmatpush1.msra.mxu0 %v49
    %74 = vmatprep.subr.mxu0 0.0
    %75 = vmatpush1.msra.mxu0 %v50
    %76 = vmatprep.subr.mxu0 0.0
    %77 = vmatpush1.msra.mxu0 %v51
    %78 = vmatprep.subr.mxu0 0.0
    %79 = vmatpush1.msra.mxu0 %v52
    %80 = vmatprep.subr.mxu0 0.0
    %81 = vmatpush1.msra.mxu0 %v53
    %82 = vmatprep.subr.mxu0 0.0
    %83 = vmatpush1.msra.mxu0 %v54
    %84 = vmatprep.subr.mxu0 0.0
    %85 = vmatpush1.msra.mxu0 %v55
    %86 = vmatprep.subr.mxu0 0.0
    %87 = vmatpush1.msra.mxu0 %v56
    %88 = vmatprep.subr.mxu0 0.0
    %89 = vmatpush1.msra.mxu0 %v57
    %90 = vmatprep.subr.mxu0 0.0
    %91 = vmatpush1.msra.mxu0 0.0
    %92 = vmatprep.subr.mxu0 0.0
    %93 = vmatpush1.msra.mxu0 0.0
    %94 = vmatprep.subr.mxu0 0.0
    %95 = vmatpush1.msra.mxu0 0.0
    %96 = vmatprep.subr.mxu0 0.0
    %97 = vmatpush1.msra.mxu0 0.0
    %98 = vmatprep.subr.mxu0 0.0
    %99 = vmatpush1.msra.mxu0 0.0
    %100 = vmatprep.subr.mxu0 0.0
    %101 = vmatpush1.msra.mxu0 0.0
    %102 = vmatprep.subr.mxu0 0.0
    %103 = vmatpush1.msra.mxu0 0.0
    %104 = vmatprep.subr.mxu0 0.0
    %105 = vmatpush1.msra.mxu0 0.0
    %106 = vmatprep.subr.mxu0 0.0
    %107 = vmatpush1.msra.mxu0 0.0
    %108 = vmatprep.subr.mxu0 0.0
    %109 = vmatpush1.msra.mxu0 0.0
    %110 = vmatprep.subr.mxu0 0.0
    %111 = vmatpush1.msra.mxu0 0.0
    %112 = vmatprep.subr.mxu0 0.0
    %113 = vmatpush1.msra.mxu0 0.0
    %114 = vmatprep.subr.mxu0 0.0
    %115 = vmatpush1.msra.mxu0 0.0
    %116 = vmatprep.subr.mxu0 0.0
    %117 = vmatpush1.msra.mxu0 0.0
    %118 = vmatprep.subr.mxu0 0.0
    %119 = vmatpush1.msra.mxu0 0.0
    %120 = vmatprep.subr.mxu0 0.0
    %121 = vmatpush1.msra.mxu0 0.0
    %122 = vmatprep.mubr.f32.mxu0 0.0
    %123 = vmatmul.mubr.f32.gmra.mrb[0].mxu0 %v41
    %v124 = vpop.f32.mrb[0].mxu0
    %v125 = vadd.f32 0.0, %v124
    %v126 = vpop.f32.mrb[0].mxu0
    %127 = vdwg.mxu0
    %p128 = scmp.eq.s32.totalorder 0, 0
    // Predicated region
    $region22: #{tpu_custom_call.1} parent=1 // pred_check
      %p129 = pneg %p128
    $region23: #{tpu_custom_call.1} parent=1 // pred_check_branch
      %131 = sbr.rel (%p129) target = $region25
    $region24: #{tpu_custom_call.1} parent=1 // pred_region
      %v132 = vld [vmem:[%s2] sm:$0x1]
      %v134 = vlaneseq
      %v135 = vshrl.u32 %v134, 7
      %v136 = vsub.s32 0, %v135
      %v137 = vrot.slane %v132, %v136
      %v139 = vadd.f32 %v137, %v125
      %140 = vst [vmem:[#allocation7] sm:$0xff] %v139
    $region25: #{tpu_custom_call.1} parent=1 // pred_fallthru
      _
    %p141 = scmp.ne.s32.totalorder 0, 0
    // Predicated region
    $region26: #{tpu_custom_call.1} parent=1 // pred_check
      %p142 = pneg %p141
    $region27: #{tpu_custom_call.1} parent=1 // pred_check_branch
      %144 = sbr.rel (%p142) target = $region29
    $region28: #{tpu_custom_call.1} parent=1 // pred_region
      %v145 = vld [vmem:[#allocation7] sm:$0xff]
      %v146 = vadd.f32 %v145, %v125
      %147 = vst [vmem:[#allocation7] sm:$0xff] %v146
    $region29: #{tpu_custom_call.1} parent=1 // pred_fallthru
      _
    // Predicated region
    $region30: #{tpu_custom_call.1} parent=1 // pred_check
      _
    $region31: #{tpu_custom_call.1} parent=1 // pred_check_branch
      %149 = sbr.rel (0) target = $region33
    $region32: #{tpu_custom_call.1} parent=1 // pred_region
      %s151 = ssub.s32 128, 128
      %152 = vsyncadd [#allocation4], %s151
      %s154 = sshll.u32 [#allocation7], 4
      %s155 = int_to_ptr.vmem [resolvable:$true] %s154
      %157 = dma.vmem_to_hbm [thread:$0]  %s155, 128, %s3, [#allocation4]
    $region33: #{tpu_custom_call.1} parent=1 // pred_fallthru
      _
    // Predicated region
    $region34: #{tpu_custom_call.1} parent=1 // pred_check
      _
    $region35: #{tpu_custom_call.1} parent=1 // pred_check_branch
      %159 = sbr.rel (0) target = $region37
    $region36: #{tpu_custom_call.1} parent=1 // pred_region
      %160 = dma.done [#allocation4], 128
    $region37: #{tpu_custom_call.1} parent=1 // pred_fallthru
      _
    %161 = vsyncpa [#allocation3], 1
    %162 = vsyncpa [#allocation6], 1
    %163 = vsyncpa [#allocation4], 1

</llo_original>
